<compile_context>
chip_gen: v7x
topology: tpu7x:2x2x1
jax: 0.10.0
libtpu: 0.0.40
codegen_flags: <defaults>
</compile_context>

<pallas_src>
import jax
import jax.numpy as jnp
from jax.experimental import pallas as pl
from jax.experimental.pallas import tpu as pltpu


def _pick_sample_block(n, l, cin, cout, k):
    """Largest divisor of n whose (b*L)-lane block keeps the live set small.

    The lane dim of every block must be a multiple of 128 or the full N*L
    (Pallas (8,128) rule), so candidates are filtered accordingly.
    """
    budget = 8 * 1024 * 1024
    per_lane_bytes = 4 * (cin * (k + 2) + 3 * cout)   # x + shifted tap + conv + out (rough)
    candidates = [b for b in range(1, n + 1)
                  if n % b == 0 and (b == n or (b * l) % 128 == 0)]
    fitting = [b for b in candidates if b * l * per_lane_bytes <= budget]
    return max(fitting) if fitting else min(candidates)


def _pick_cout_block(cout):
    if cout <= 256:
        return cout
    for b in range(256, 7, -1):
        if cout % b == 0 and b % 8 == 0:
            return b
    return cout


def _make_conv(k_taps, pad, l, mxu_dtype):
    """Returns conv(x_ref, w_ref) -> (cout_blk, B*L) f32.

    x_ref: (Cin, B*L) block (B whole samples flattened into the lane axis).
    w_ref: (K, cout_blk, Cin) taps-major weight.
    K accumulating MXU matmuls; shifted views come from pltpu.roll (XLU) with
    per-sample boundary masks (lane_index mod L), so rolls never leak data across
    sample boundaries or block edges.
    """
    def conv(x_ref, w_ref):
        x = x_ref[...]                                              # (Cin, BL)
        cin, bl = x.shape
        lmod = jax.lax.broadcasted_iota(jnp.int32, (cin, bl), 1) % l
        acc = None
        for k in range(k_taps):
            off = k - pad                                           # uses x[:, pos + off]
            if off == 0:
                xk = x
            else:
                xk = pltpu.roll(x, shift=(-off) % bl, axis=1)       # xk[:, j] = x[:, j + off]
                if off < 0:
                    xk = jnp.where(lmod < -off, jnp.zeros_like(xk), xk)       # left 'same' pad
                else:
                    xk = jnp.where(lmod >= l - off, jnp.zeros_like(xk), xk)   # right 'same' pad
            part = jnp.dot(w_ref[k].astype(mxu_dtype), xk.astype(mxu_dtype),
                           preferred_element_type=jnp.float32)      # MXU, f32 accumulate
            acc = part if acc is None else acc + part
        return acc
    return conv


def conv_layer_1d(x_ncl, weight_oik, gamma, beta, padding=1, eps=1e-5, mxu_dtype=None):
    """ConvLayer1D forward. x_ncl: (N, Cin, L); weight_oik: (Cout, Cin, K) -> (N, Cout, L)."""
    n, cin, l = x_ncl.shape
    cout, cin_w, k_taps = weight_oik.shape
    assert cin_w == cin
    pad = padding
    assert 2 * pad == k_taps - 1, "'same'-length conv (default kernel_size=3, padding=1)"

    if mxu_dtype is None:
        mxu_dtype = jnp.bfloat16 if x_ncl.dtype == jnp.bfloat16 else jnp.float32

    b = _pick_sample_block(n, l, cin, cout, k_taps)
    nb = n // b
    bl = b * l
    cout_blk = _pick_cout_block(cout)
    n_co = cout // cout_blk

    # Layout plumbing (tiny XLA ops): samples flattened into the lane axis so matmul RHS
    # and output stores are lane-dense; taps-major weight for per-tap static slicing.
    xt = jnp.transpose(x_ncl, (1, 0, 2)).reshape(cin, n * l)        # (Cin, N*L)
    w = jnp.transpose(weight_oik, (2, 0, 1))                        # (K, Cout, Cin)

    conv = _make_conv(k_taps, pad, l, mxu_dtype)

    # ---- pass 1: per-(Cout-block, sample-block) partial batch statistics (stateless) ----
    def stats_kernel(x_ref, w_ref, sum_ref, sq_ref):
        c = conv(x_ref, w_ref)                                      # (cout_blk, BL) f32
        sum_ref[...] = jnp.sum(c, axis=1, keepdims=True)
        sq_ref[...] = jnp.sum(c * c, axis=1, keepdims=True)

    part_sum, part_sq = pl.pallas_call(
        stats_kernel,
        out_shape=(jax.ShapeDtypeStruct((nb, cout, 1), jnp.float32),
                   jax.ShapeDtypeStruct((nb, cout, 1), jnp.float32)),
        grid_spec=pltpu.PrefetchScalarGridSpec(
            num_scalar_prefetch=0,
            grid=(n_co, nb),
            in_specs=[
                pl.BlockSpec((cin, bl), lambda co, s: (0, s)),
                pl.BlockSpec((k_taps, cout_blk, cin), lambda co, s: (0, co, 0)),
            ],
            out_specs=[
                pl.BlockSpec((None, cout_blk, 1), lambda co, s: (s, co, 0)),
                pl.BlockSpec((None, cout_blk, 1), lambda co, s: (s, co, 0)),
            ],
        ),
        compiler_params=pltpu.CompilerParams(
            dimension_semantics=("parallel", "parallel")),
    )(xt, w)

    # ---- fold BN into one (scale, bias) pair: O(Cout) work, done in the wrapper ----
    count = float(n * l)          # BatchNorm1d training mode: biased variance over (N, L)
    total_sum = jnp.sum(part_sum, axis=0)[:, 0]
    total_sq = jnp.sum(part_sq, axis=0)[:, 0]
    mean = total_sum / count
    var = jnp.maximum(total_sq / count - mean * mean, 0.0)
    scale = gamma.astype(jnp.float32) * jax.lax.rsqrt(var + eps)    # (Cout,)
    bias = beta.astype(jnp.float32) - mean * scale
    scale = scale.reshape(cout, 1)
    bias = bias.reshape(cout, 1)

    # ---- pass 2: recompute conv, apply scale*x+bias + ELU, lane-dense store ----
    def apply_kernel(x_ref, w_ref, scale_ref, bias_ref, o_ref):
        c = conv(x_ref, w_ref)                                      # (cout_blk, BL) f32
        y = c * scale_ref[...] + bias_ref[...]
        y = jnp.where(y > 0.0, y, jnp.expm1(jnp.minimum(y, 0.0)))   # ELU(alpha=1), clamped
        o_ref[...] = y.astype(o_ref.dtype)

    out_t = pl.pallas_call(
        apply_kernel,
        out_shape=jax.ShapeDtypeStruct((cout, n * l), x_ncl.dtype),
        grid_spec=pltpu.PrefetchScalarGridSpec(
            num_scalar_prefetch=0,
            grid=(n_co, nb),
            in_specs=[
                pl.BlockSpec((cin, bl), lambda co, s: (0, s)),
                pl.BlockSpec((k_taps, cout_blk, cin), lambda co, s: (0, co, 0)),
                pl.BlockSpec((cout_blk, 1), lambda co, s: (co, 0)),
                pl.BlockSpec((cout_blk, 1), lambda co, s: (co, 0)),
            ],
            out_specs=pl.BlockSpec((cout_blk, bl), lambda co, s: (co, s)),
        ),
        compiler_params=pltpu.CompilerParams(
            dimension_semantics=("parallel", "parallel")),
    )(xt, w, scale, bias)

    return jnp.transpose(out_t.reshape(cout, n, l), (1, 0, 2))


def _reference(x_ncl, weight_oik, gamma, beta, padding=1):
    conv = jax.lax.conv_general_dilated(
        x_ncl, weight_oik, window_strides=(1,), padding=((padding, padding),),
        dimension_numbers=("NCH", "OIH", "NCH"))
    mean = conv.mean(axis=(0, 2), keepdims=True)
    var = ((conv - mean) ** 2).mean(axis=(0, 2), keepdims=True)
    y = (conv - mean) / jnp.sqrt(var + 1e-5)
    y = y * gamma[None, :, None] + beta[None, :, None]
    return jnp.where(y > 0, y, jnp.expm1(y))


if __name__ == "__main__":
    # ConvLayer1D(input_size=4, output_size=8) defaults:
    # kernel_size=3, stride=1, padding=1, normalize=True -> conv has no bias.
    N, Cin, Cout, L, K = 2, 4, 8, 16, 3

    key = jax.random.PRNGKey(0)
    kx, kw = jax.random.split(key)
    x = jax.random.normal(kx, (N, Cin, L), dtype=jnp.float32)
    weight = jax.random.normal(kw, (Cout, Cin, K), dtype=jnp.float32) * 0.1
    gamma = jnp.ones((Cout,), jnp.float32)   # BatchNorm1d default affine init
    beta = jnp.zeros((Cout,), jnp.float32)

    out = conv_layer_1d(x, weight, gamma, beta, padding=1)
    out = jax.block_until_ready(out)

    ref = _reference(x, weight, gamma, beta, padding=1)
    assert out.shape == (N, Cout, L), out.shape
    assert jnp.allclose(out, ref, atol=1e-4, rtol=1e-4), float(jnp.abs(out - ref).max())

    print("KERNEL_OK")
</pallas_src>

<mosaic_0001>
module attributes {stable_mosaic.version = 11 : i64} {
  func.func @stats_kernel(%arg0: i32, %arg1: i32, %arg2: memref<4x32xf32, #tpu.memory_space<vmem>>, %arg3: memref<3x8x4xf32, #tpu.memory_space<vmem>>, %arg4: memref<1x8x1xf32, #tpu.memory_space<vmem>>, %arg5: memref<1x8x1xf32, #tpu.memory_space<vmem>>) attributes {dimension_semantics = [#tpu.dimension_semantics<parallel>, #tpu.dimension_semantics<parallel>], iteration_bounds = array<i64: 1, 1>, scalar_prefetch = 0 : i64, scratch_operands = 0 : i64, tpu.core_type = #tpu.core_type<tc>, window_params = [{transform_indices = @transform_0, window_bounds = array<i64: 4, 32>}, {transform_indices = @transform_1, window_bounds = array<i64: 3, 8, 4>}, {transform_indices = @transform_2, window_bounds = array<i64: 1, 8, 1>}, {transform_indices = @transform_3, window_bounds = array<i64: 1, 8, 1>}]} {
    %c0 = arith.constant 0 : index
    %c0_0 = arith.constant 0 : index
    %0 = vector.load %arg2[%c0, %c0_0] : memref<4x32xf32, #tpu.memory_space<vmem>>, vector<4x32xf32>
    %1 = tpu.iota {dimensions = array<i32: 1>} : vector<4x32xi32>
    %c16_i32 = arith.constant 16 : i32
    %c0_i32 = arith.constant 0 : i32
    %2 = arith.cmpi eq, %c16_i32, %c0_i32 : i32
    %c1_i32 = arith.constant 1 : i32
    %3 = arith.select %2, %c1_i32, %c16_i32 : i32
    %4 = vector.broadcast %3 : i32 to vector<4x32xi32>
    %5 = arith.remsi %1, %4 : vector<4x32xi32>
    %c0_i32_1 = arith.constant 0 : i32
    %6 = vector.broadcast %c0_i32_1 : i32 to vector<4x32xi32>
    %7 = arith.cmpi ne, %5, %6 : vector<4x32xi32>
    %c0_i32_2 = arith.constant 0 : i32
    %8 = vector.broadcast %c0_i32_2 : i32 to vector<4x32xi32>
    %9 = arith.cmpi slt, %5, %8 : vector<4x32xi32>
    %c0_i32_3 = arith.constant 0 : i32
    %10 = arith.cmpi slt, %3, %c0_i32_3 : i32
    %11 = vector.broadcast %10 : i1 to vector<4x32xi1>
    %12 = vector.broadcast %11 : vector<4x32xi1> to vector<4x32xi1>
    %13 = arith.xori %9, %12 : vector<4x32xi1>
    %14 = arith.andi %13, %7 : vector<4x32xi1>
    %15 = vector.broadcast %3 : i32 to vector<4x32xi32>
    %16 = arith.addi %5, %15 : vector<4x32xi32>
    %17 = arith.select %14, %16, %5 : vector<4x32xi1>, vector<4x32xi32>
    %c1_i32_4 = arith.constant 1 : i32
    %18 = tpu.dynamic_rotate %0 by %c1_i32_4 dim 1 : vector<4x32xf32>, i32 -> vector<4x32xf32>
    %c1_i32_5 = arith.constant 1 : i32
    %19 = vector.broadcast %c1_i32_5 : i32 to vector<4x32xi32>
    %20 = arith.cmpi slt, %17, %19 : vector<4x32xi32>
    %cst = arith.constant 0.000000e+00 : f32
    %21 = vector.broadcast %cst : f32 to vector<4x32xf32>
    %22 = arith.select %20, %21, %18 : vector<4x32xi1>, vector<4x32xf32>
    %c0_6 = arith.constant 0 : index
    %c0_7 = arith.constant 0 : index
    %c0_8 = arith.constant 0 : index
    %23 = vector.load %arg3[%c0_6, %c0_7, %c0_8] : memref<3x8x4xf32, #tpu.memory_space<vmem>>, vector<1x8x4xf32>
    %24 = vector.shape_cast %23 : vector<1x8x4xf32> to vector<8x4xf32>
    %cst_9 = arith.constant dense<0.000000e+00> : vector<8x32xf32>
    %25 = tpu.matmul %24, %22, %cst_9 {dimension_numbers = #tpu.dot_dimension_numbers<[1], [0], [0], [1], [0, 0, 1, 1], [], []>} : vector<8x4xf32>, vector<4x32xf32>, vector<8x32xf32> -> vector<8x32xf32>
    %c1 = arith.constant 1 : index
    %c0_10 = arith.constant 0 : index
    %c0_11 = arith.constant 0 : index
    %26 = vector.load %arg3[%c1, %c0_10, %c0_11] : memref<3x8x4xf32, #tpu.memory_space<vmem>>, vector<1x8x4xf32>
    %27 = vector.shape_cast %26 : vector<1x8x4xf32> to vector<8x4xf32>
    %cst_12 = arith.constant dense<0.000000e+00> : vector<8x32xf32>
    %28 = tpu.matmul %27, %0, %cst_12 {dimension_numbers = #tpu.dot_dimension_numbers<[1], [0], [0], [1], [0, 0, 1, 1], [], []>} : vector<8x4xf32>, vector<4x32xf32>, vector<8x32xf32> -> vector<8x32xf32>
    %29 = arith.addf %25, %28 : vector<8x32xf32>
    %c31_i32 = arith.constant 31 : i32
    %30 = tpu.dynamic_rotate %0 by %c31_i32 dim 1 : vector<4x32xf32>, i32 -> vector<4x32xf32>
    %c15_i32 = arith.constant 15 : i32
    %31 = vector.broadcast %c15_i32 : i32 to vector<4x32xi32>
    %32 = arith.cmpi sge, %17, %31 : vector<4x32xi32>
    %cst_13 = arith.constant 0.000000e+00 : f32
    %33 = vector.broadcast %cst_13 : f32 to vector<4x32xf32>
    %34 = arith.select %32, %33, %30 : vector<4x32xi1>, vector<4x32xf32>
    %c2 = arith.constant 2 : index
    %c0_14 = arith.constant 0 : index
    %c0_15 = arith.constant 0 : index
    %35 = vector.load %arg3[%c2, %c0_14, %c0_15] : memref<3x8x4xf32, #tpu.memory_space<vmem>>, vector<1x8x4xf32>
    %36 = vector.shape_cast %35 : vector<1x8x4xf32> to vector<8x4xf32>
    %cst_16 = arith.constant dense<0.000000e+00> : vector<8x32xf32>
    %37 = tpu.matmul %36, %34, %cst_16 {dimension_numbers = #tpu.dot_dimension_numbers<[1], [0], [0], [1], [0, 0, 1, 1], [], []>} : vector<8x4xf32>, vector<4x32xf32>, vector<8x32xf32> -> vector<8x32xf32>
    %38 = arith.addf %29, %37 : vector<8x32xf32>
    %cst_17 = arith.constant dense<0.000000e+00> : vector<8xf32>
    %39 = vector.multi_reduction <add>, %38, %cst_17 [1] : vector<8x32xf32> to vector<8xf32>
    %40 = vector.shape_cast %39 : vector<8xf32> to vector<8x1xf32>
    %c0_18 = arith.constant 0 : index
    %c0_19 = arith.constant 0 : index
    %c0_20 = arith.constant 0 : index
    %41 = vector.load %arg4[%c0_18, %c0_19, %c0_20] : memref<1x8x1xf32, #tpu.memory_space<vmem>>, vector<1x8x1xf32>
    %42 = vector.shape_cast %41 : vector<1x8x1xf32> to vector<8x1xf32>
    %43 = vector.shape_cast %40 : vector<8x1xf32> to vector<1x8x1xf32>
    tpu.vector_store %arg4[%c0_18, %c0_19, %c0_20], %43 {strides = array<i32>} : memref<1x8x1xf32, #tpu.memory_space<vmem>>, vector<1x8x1xf32>,
    %44 = arith.mulf %38, %38 : vector<8x32xf32>
    %cst_21 = arith.constant dense<0.000000e+00> : vector<8xf32>
    %45 = vector.multi_reduction <add>, %44, %cst_21 [1] : vector<8x32xf32> to vector<8xf32>
    %46 = vector.shape_cast %45 : vector<8xf32> to vector<8x1xf32>
    %c0_22 = arith.constant 0 : index
    %c0_23 = arith.constant 0 : index
    %c0_24 = arith.constant 0 : index
    %47 = vector.load %arg5[%c0_22, %c0_23, %c0_24] : memref<1x8x1xf32, #tpu.memory_space<vmem>>, vector<1x8x1xf32>
    %48 = vector.shape_cast %47 : vector<1x8x1xf32> to vector<8x1xf32>
    %49 = vector.shape_cast %46 : vector<8x1xf32> to vector<1x8x1xf32>
    tpu.vector_store %arg5[%c0_22, %c0_23, %c0_24], %49 {strides = array<i32>} : memref<1x8x1xf32, #tpu.memory_space<vmem>>, vector<1x8x1xf32>,
    return
  }
  func.func @transform_0(%arg0: i32, %arg1: i32) -> (i32, i32) {
    %c0_i32 = arith.constant 0 : i32
    %c0_i32_0 = arith.constant 0 : i32
    return %c0_i32, %arg1 : i32, i32
  }
  func.func @transform_1(%arg0: i32, %arg1: i32) -> (i32, i32, i32) {
    %c0_i32 = arith.constant 0 : i32
    %c0_i32_0 = arith.constant 0 : i32
    %c0_i32_1 = arith.constant 0 : i32
    return %c0_i32, %arg0, %c0_i32_0 : i32, i32, i32
  }
  func.func @transform_2(%arg0: i32, %arg1: i32) -> (i32, i32, i32) {
    %c0_i32 = arith.constant 0 : i32
    %c0_i32_0 = arith.constant 0 : i32
    return %arg1, %arg0, %c0_i32 : i32, i32, i32
  }
  func.func @transform_3(%arg0: i32, %arg1: i32) -> (i32, i32, i32) {
    %c0_i32 = arith.constant 0 : i32
    %c0_i32_0 = arith.constant 0 : i32
    return %arg1, %arg0, %c0_i32 : i32, i32, i32
  }
}

</mosaic_0001>

<llo_original>
// kernel: tpu_custom_call.1
$region0: #{tpu_custom_call.1}
  #allocation0 [shape = 'u32[]', space=smem, size = 0x4, offset = 0x4, fixed_abs, tag = 'smem constant byte address 0x4 - core index']
  #allocation1 [shape = 'u32[144,128]{1,0:T(1,128)}', space=vmem, size = 0x12000, scoped, tag = 'internal scratch']
  %s0 = inlined_call_operand.vmem [shape: f32[4,32], index: 0, kind: input, shape index: {}]
  %s1 = inlined_call_operand.vmem [shape: f32[3,8,4], index: 1, kind: input, shape index: {}]
  %s2 = inlined_call_operand.vmem [shape: f32[1,8,1], index: 2, kind: output, shape index: {0}]
  %s3 = inlined_call_operand.vmem [shape: f32[1,8,1], index: 3, kind: output, shape index: {1}]
  %4 = xla_tuple %s2, %s3
  %s5 = sld [smem:[#allocation0]]
  $region26: #{tpu_custom_call.1} parent=0
    _
  %s7 = ssub.s32 1, %s5
  %s8 = scalar_select 0, %s7, %s5
  // Predicated region
  $region2: #{tpu_custom_call.1} parent=0 // pred_check
    _
  $region3: #{tpu_custom_call.1} parent=0 // pred_check_branch
    %10 = sbr.rel (0) target = $region5
  $region4: #{tpu_custom_call.1} parent=0 // pred_region
    _
  $region5: #{tpu_custom_call.1} parent=0 // pred_fallthru
    _
  // Predicated region
  $region6: #{tpu_custom_call.1} parent=0 // pred_check
    _
  $region7: #{tpu_custom_call.1} parent=0 // pred_check_branch
    %12 = sbr.rel (0) target = $region9
  $region8: #{tpu_custom_call.1} parent=0 // pred_region
    _
  $region9: #{tpu_custom_call.1} parent=0 // pred_fallthru
    _
  %v13 = vld [vmem:[%s0] sm:$0xf]
  %v14 = vlaneseq
  %v15 = vand.u32 %v14, 127
  %vm16 = vcmp.lt.s32.totalorder %v15, 0
  %v17 = vsub.s32 0, %v15
  %v18 = vsel %vm16, %v17, %v15
  %v19 = vshrl.u32 %v18, 4
  %v20 = vand.u32 %v18, 15
  %v21 = vsub.s32 0, %v20
  %v22 = vsel %vm16, %v21, %v20
  %vm23 = vcmp.ne.s32.totalorder %v22, 0
  %vm24 = vcmp.lt.s32.totalorder %v22, 0
  %vm25 = vmand %vm24, %vm23
  %v26 = vadd.s32 %v22, 16
  %v27 = vsel %vm25, %v26, %v22
  %vm28 = vcmask 1047808
  %29 = vrot.lane.b32.xlu0 %v13, 32
  %v30 = vpop.permute.xlu0 %29
  %v31 = vsel %vm28, %v30, %v13
  %32 = vrot.lane.b32.xlu0 %v31, 32
  %v33 = vpop.permute.xlu0 %32
  %v34 = vsel %vm28, %v33, %v13
  %vm35 = vcmp.lt.s32.totalorder %v27, 1
  %37 = vrot.lane.b32.xlu0 %v34, 97
  %v38 = vpop.permute.xlu0 %37
  %v40 = vsel %vm35, 0.0, %v38
  %v41 = vld [vmem:[%s1] sm:$0xff]
  %s42 = scalar_lea.vmem %s1, 8
  %v43 = vld [vmem:[%s42] sm:$0xff]
  %vm44 = vcmask 31744
  %v46 = vsel %vm44, %v43, 0
  %vm48 = vcmask 1043456
  %v50 = vsel %vm48, %v13, 0
  %52 = vmatprep.subr.mxu0 0.0
  %53 = vmatpush1.msra.mxu0 %v50
  %54 = vmatprep.subr.mxu0 0.0
  %55 = vmatpush1.msra.mxu0 0.0
  %56 = vmatprep.subr.mxu0 0.0
  %57 = vmatpush1.msra.mxu0 0.0
  %58 = vmatprep.subr.mxu0 0.0
  %59 = vmatpush1.msra.mxu0 0.0
  %60 = vmatprep.subr.mxu0 0.0
  %61 = vmatpush1.msra.mxu0 0.0
  %62 = vmatprep.subr.mxu0 0.0
  %63 = vmatpush1.msra.mxu0 0.0
  %64 = vmatprep.subr.mxu0 0.0
  %65 = vmatpush1.msra.mxu0 0.0
  %66 = vmatprep.subr.mxu0 0.0
  %67 = vmatpush1.msra.mxu0 0.0
  %68 = vmatprep.subr.mxu0 0.0
  %69 = vmatpush1.msra.mxu0 0.0
  %70 = vmatprep.subr.mxu0 0.0
  %71 = vmatpush1.msra.mxu0 0.0
  %72 = vmatprep.subr.mxu0 0.0
  %73 = vmatpush1.msra.mxu0 0.0
  %74 = vmatprep.subr.mxu0 0.0
  %75 = vmatpush1.msra.mxu0 0.0
  %76 = vmatprep.subr.mxu0 0.0
  %77 = vmatpush1.msra.mxu0 0.0
  %78 = vmatprep.subr.mxu0 0.0
  %79 = vmatpush1.msra.mxu0 0.0
  %80 = vmatprep.subr.mxu0 0.0
  %81 = vmatpush1.msra.mxu0 0.0
  %82 = vmatprep.subr.mxu0 0.0
  %83 = vmatpush1.msra.mxu0 0.0
  %84 = vmatprep.subr.mxu0 0.0
  %85 = vmatpush1.msra.mxu0 0.0
  %86 = vmatprep.subr.mxu0 0.0
  %87 = vmatpush1.msra.mxu0 0.0
  %88 = vmatprep.subr.mxu0 0.0
  %89 = vmatpush1.msra.mxu0 0.0
  %90 = vmatprep.subr.mxu0 0.0
  %91 = vmatpush1.msra.mxu0 0.0
  %92 = vmatprep.subr.mxu0 0.0
  %93 = vmatpush1.msra.mxu0 0.0
  %94 = vmatprep.subr.mxu0 0.0
  %95 = vmatpush1.msra.mxu0 0.0
  %96 = vmatprep.subr.mxu0 0.0
  %97 = vmatpush1.msra.mxu0 0.0
  %98 = vmatprep.subr.mxu0 0.0
  %99 = vmatpush1.msra.mxu0 0.0
  %100 = vmatprep.subr.mxu0 0.0
  %101 = vmatpush1.msra.mxu0 0.0
  %102 = vmatprep.subr.mxu0 0.0
  %103 = vmatpush1.msra.mxu0 0.0
  %104 = vmatprep.subr.mxu0 0.0
  %105 = vmatpush1.msra.mxu0 0.0
  %106 = vmatprep.subr.mxu0 0.0
  %107 = vmatpush1.msra.mxu0 0.0
  %108 = vmatprep.subr.mxu0 0.0
  %109 = vmatpush1.msra.mxu0 0.0
  %110 = vmatprep.subr.mxu0 0.0
  %111 = vmatpush1.msra.mxu0 0.0
  %112 = vmatprep.subr.mxu0 0.0
  %113 = vmatpush1.msra.mxu0 0.0
  %114 = vmatprep.subr.mxu0 0.0
  %115 = vmatpush1.msra.mxu0 0.0
  %116 = vmatprep.mubr.f32.mxu0 0.0
  %117 = vmatmul.mubr.f32.gmra.mrb[0].mxu0 %v46
  %v118 = vpop.f32.mrb[0].mxu0
  %v119 = vadd.f32 0.0, %v118
  %v120 = vpop.f32.mrb[0].mxu0
  %121 = vdwg.mxu0
  %v123 = vsel %vm44, %v41, 0
  %v126 = vsel %vm48, %v40, 0
  %128 = vmatprep.subr.mxu0 0.0
  %129 = vmatpush1.msra.mxu0 %v126
  %130 = vmatprep.subr.mxu0 0.0
  %131 = vmatpush1.msra.mxu0 0.0
  %132 = vmatprep.subr.mxu0 0.0
  %133 = vmatpush1.msra.mxu0 0.0
  %134 = vmatprep.subr.mxu0 0.0
  %135 = vmatpush1.msra.mxu0 0.0
  %136 = vmatprep.subr.mxu0 0.0
  %137 = vmatpush1.msra.mxu0 0.0
  %138 = vmatprep.subr.mxu0 0.0
  %139 = vmatpush1.msra.mxu0 0.0
  %140 = vmatprep.subr.mxu0 0.0
  %141 = vmatpush1.msra.mxu0 0.0
  %142 = vmatprep.subr.mxu0 0.0
  %143 = vmatpush1.msra.mxu0 0.0
  %144 = vmatprep.subr.mxu0 0.0
  %145 = vmatpush1.msra.mxu0 0.0
  %146 = vmatprep.subr.mxu0 0.0
  %147 = vmatpush1.msra.mxu0 0.0
  %148 = vmatprep.subr.mxu0 0.0
  %149 = vmatpush1.msra.mxu0 0.0
  %150 = vmatprep.subr.mxu0 0.0
  %151 = vmatpush1.msra.mxu0 0.0
  %152 = vmatprep.subr.mxu0 0.0
  %153 = vmatpush1.msra.mxu0 0.0
  %154 = vmatprep.subr.mxu0 0.0
  %155 = vmatpush1.msra.mxu0 0.0
  %156 = vmatprep.subr.mxu0 0.0
  %157 = vmatpush1.msra.mxu0 0.0
  %158 = vmatprep.subr.mxu0 0.0
  %159 = vmatpush1.msra.mxu0 0.0
  %160 = vmatprep.subr.mxu0 0.0
  %161 = vmatpush1.msra.mxu0 0.0
  %162 = vmatprep.subr.mxu0 0.0
  %163 = vmatpush1.msra.mxu0 0.0
  %164 = vmatprep.subr.mxu0 0.0
  %165 = vmatpush1.msra.mxu0 0.0
  %166 = vmatprep.subr.mxu0 0.0
  %167 = vmatpush1.msra.mxu0 0.0
  %168 = vmatprep.subr.mxu0 0.0
  %169 = vmatpush1.msra.mxu0 0.0
  %170 = vmatprep.subr.mxu0 0.0
  %171 = vmatpush1.msra.mxu0 0.0
  %172 = vmatprep.subr.mxu0 0.0
  %173 = vmatpush1.msra.mxu0 0.0
  %174 = vmatprep.subr.mxu0 0.0
  %175 = vmatpush1.msra.mxu0 0.0
  %176 = vmatprep.subr.mxu0 0.0
  %177 = vmatpush1.msra.mxu0 0.0
  %178 = vmatprep.subr.mxu0 0.0
  %179 = vmatpush1.msra.mxu0 0.0
  %180 = vmatprep.subr.mxu0 0.0
  %181 = vmatpush1.msra.mxu0 0.0
  %182 = vmatprep.subr.mxu0 0.0
  %183 = vmatpush1.msra.mxu0 0.0
  %184 = vmatprep.subr.mxu0 0.0
  %185 = vmatpush1.msra.mxu0 0.0
  %186 = vmatprep.subr.mxu0 0.0
  %187 = vmatpush1.msra.mxu0 0.0
  %188 = vmatprep.subr.mxu0 0.0
  %189 = vmatpush1.msra.mxu0 0.0
  %190 = vmatprep.subr.mxu0 0.0
  %191 = vmatpush1.msra.mxu0 0.0
  %192 = vmatprep.mubr.f32.mxu0 0.0
  %193 = vmatmul.mubr.f32.gmra.mrb[0].mxu0 %v123
  %v194 = vpop.f32.mrb[0].mxu0
  %v195 = vadd.f32 %v119, %v194
  %v196 = vpop.f32.mrb[0].mxu0
  %197 = vdwg.mxu0
  %vm198 = vcmp.ge.s32.totalorder %v27, 15
  %199 = vrot.lane.b32.xlu0 %v34, 127
  %v200 = vpop.permute.xlu0 %199
  %v202 = vsel %vm198, 0.0, %v200
  %s203 = scalar_lea.vmem %s1, 16
  %v204 = vld [vmem:[%s203] sm:$0xff]
  %v206 = vsel %vm44, %v204, 0
  %v209 = vsel %vm48, %v202, 0
  %211 = vmatprep.subr.mxu0 0.0
  %212 = vmatpush1.msra.mxu0 %v209
  %213 = vmatprep.subr.mxu0 0.0
  %214 = vmatpush1.msra.mxu0 0.0
  %215 = vmatprep.subr.mxu0 0.0
  %216 = vmatpush1.msra.mxu0 0.0
  %217 = vmatprep.subr.mxu0 0.0
  %218 = vmatpush1.msra.mxu0 0.0
  %219 = vmatprep.subr.mxu0 0.0
  %220 = vmatpush1.msra.mxu0 0.0
  %221 = vmatprep.subr.mxu0 0.0
  %222 = vmatpush1.msra.mxu0 0.0
  %223 = vmatprep.subr.mxu0 0.0
  %224 = vmatpush1.msra.mxu0 0.0
  %225 = vmatprep.subr.mxu0 0.0
  %226 = vmatpush1.msra.mxu0 0.0
  %227 = vmatprep.subr.mxu0 0.0
  %228 = vmatpush1.msra.mxu0 0.0
  %229 = vmatprep.subr.mxu0 0.0
  %230 = vmatpush1.msra.mxu0 0.0
  %231 = vmatprep.subr.mxu0 0.0
  %232 = vmatpush1.msra.mxu0 0.0
  %233 = vmatprep.subr.mxu0 0.0
  %234 = vmatpush1.msra.mxu0 0.0
  %235 = vmatprep.subr.mxu0 0.0
  %236 = vmatpush1.msra.mxu0 0.0
  %237 = vmatprep.subr.mxu0 0.0
  %238 = vmatpush1.msra.mxu0 0.0
  %239 = vmatprep.subr.mxu0 0.0
  %240 = vmatpush1.msra.mxu0 0.0
  %241 = vmatprep.subr.mxu0 0.0
  %242 = vmatpush1.msra.mxu0 0.0
  %243 = vmatprep.subr.mxu0 0.0
  %244 = vmatpush1.msra.mxu0 0.0
  %245 = vmatprep.subr.mxu0 0.0
  %246 = vmatpush1.msra.mxu0 0.0
  %247 = vmatprep.subr.mxu0 0.0
  %248 = vmatpush1.msra.mxu0 0.0
  %249 = vmatprep.subr.mxu0 0.0
  %250 = vmatpush1.msra.mxu0 0.0
  %251 = vmatprep.subr.mxu0 0.0
  %252 = vmatpush1.msra.mxu0 0.0
  %253 = vmatprep.subr.mxu0 0.0
  %254 = vmatpush1.msra.mxu0 0.0
  %255 = vmatprep.subr.mxu0 0.0
  %256 = vmatpush1.msra.mxu0 0.0
  %257 = vmatprep.subr.mxu0 0.0
  %258 = vmatpush1.msra.mxu0 0.0
  %259 = vmatprep.subr.mxu0 0.0
  %260 = vmatpush1.msra.mxu0 0.0
  %261 = vmatprep.subr.mxu0 0.0
  %262 = vmatpush1.msra.mxu0 0.0
  %263 = vmatprep.subr.mxu0 0.0
  %264 = vmatpush1.msra.mxu0 0.0
  %265 = vmatprep.subr.mxu0 0.0
  %266 = vmatpush1.msra.mxu0 0.0
  %267 = vmatprep.subr.mxu0 0.0
  %268 = vmatpush1.msra.mxu0 0.0
  %269 = vmatprep.subr.mxu0 0.0
  %270 = vmatpush1.msra.mxu0 0.0
  %271 = vmatprep.subr.mxu0 0.0
  %272 = vmatpush1.msra.mxu0 0.0
  %273 = vmatprep.subr.mxu0 0.0
  %274 = vmatpush1.msra.mxu0 0.0
  %275 = vmatprep.mubr.f32.mxu0 0.0
  %276 = vmatmul.mubr.f32.gmra.mrb[0].mxu0 %v206
  %v277 = vpop.f32.mrb[0].mxu0
  %v278 = vadd.f32 0.0, %v277
  %v279 = vpop.f32.mrb[0].mxu0
  %280 = vdwg.mxu0
  %v281 = vadd.f32 %v195, %v278
  %vm282 = vcmask 261120
  %v283 = vsel %vm282, %v281, 0.0
  %284 = vadd.xlane.f32.xlu0 %v283
  %v285 = vpop.xlane.xlu0 %284
  %vm286 = vcmask 7168
  %287 = vst.msk [vmem:[%s2] sm:$0xff] %vm286, %v285
  %v288 = vmul.f32 %v281, %v281
  %v289 = vsel %vm282, %v288, 0.0
  %290 = vadd.xlane.f32.xlu0 %v289
  %v291 = vpop.xlane.xlu0 %290
  %292 = vst.msk [vmem:[%s3] sm:$0xff] %vm286, %v291
  // Predicated region
  $region10: #{tpu_custom_call.1} parent=0 // pred_check
    _
  $region11: #{tpu_custom_call.1} parent=0 // pred_check_branch
    %294 = sbr.rel (0) target = $region13
  $region12: #{tpu_custom_call.1} parent=0 // pred_region
    _
  $region13: #{tpu_custom_call.1} parent=0 // pred_fallthru
    _
  // Predicated region
  $region14: #{tpu_custom_call.1} parent=0 // pred_check
    _
  $region15: #{tpu_custom_call.1} parent=0 // pred_check_branch
    %296 = sbr.rel (0) target = $region17
  $region16: #{tpu_custom_call.1} parent=0 // pred_region
    _
  $region17: #{tpu_custom_call.1} parent=0 // pred_fallthru
    _
  // Predicated region
  $region18: #{tpu_custom_call.1} parent=0 // pred_check
    _
  $region19: #{tpu_custom_call.1} parent=0 // pred_check_branch
    %298 = sbr.rel (0) target = $region21
  $region20: #{tpu_custom_call.1} parent=0 // pred_region
    _
  $region21: #{tpu_custom_call.1} parent=0 // pred_fallthru
    _
  // Predicated region
  $region22: #{tpu_custom_call.1} parent=0 // pred_check
    _
  $region23: #{tpu_custom_call.1} parent=0 // pred_check_branch
    %300 = sbr.rel (0) target = $region25
  $region24: #{tpu_custom_call.1} parent=0 // pred_region
    _
  $region25: #{tpu_custom_call.1} parent=0 // pred_fallthru
    _

</llo_original>
